<compile_context>
chip_gen: v5e
topology: v5e:2x2
jax: 0.10.0
libtpu: 0.0.40
codegen_flags: <defaults>
</compile_context>

<pallas_src>
import functools

import jax
import jax.numpy as jnp
from jax.experimental import pallas as pl
from jax.experimental.pallas import tpu as pltpu


def mlp_kernel(x_ref, w1_ref, w2_ref, b2_ref, w3_ref, b3_ref, o_ref):
    # ---- Layer 1: Linear(in -> hidden) + ReLU, on the MXU.
    # x tile is (tb, 8) bf16 = [state(4) | 1.0 | zero pad]; w1 is (8, H) bf16 with
    # b1 folded in as the row matching the ones column. f32 accumulation.
    h1 = jnp.dot(x_ref[...], w1_ref[...], preferred_element_type=jnp.float32)
    h1 = jnp.maximum(h1, 0.0)
    # Dropout(0.1) -> identity in eval mode.

    # ---- Layer 2: Linear(H -> H) + ReLU, bf16 MXU inputs, f32 accumulation.
    h2 = jnp.dot(h1.astype(jnp.bfloat16), w2_ref[...],
                 preferred_element_type=jnp.float32)
    h2 = jnp.maximum(h2 + b2_ref[...], 0.0)
    # Dropout(0.1) -> identity in eval mode.

    # ---- Layer 3: Linear(H -> out), bf16 MXU inputs, f32 accumulation.
    out = jnp.dot(h2.astype(jnp.bfloat16), w3_ref[...],
                  preferred_element_type=jnp.float32) + b3_ref[...]
    o_ref[...] = out.astype(o_ref.dtype)


def _round_up(n, m):
    return ((n + m - 1) // m) * m


def _padded_vmem_bytes(rows, cols, itemsize):
    """Bytes a (rows, cols) buffer actually occupies in VMEM ((8,128) tile grain)."""
    return _round_up(max(rows, 1), 8) * _round_up(max(cols, 1), 128) * itemsize


def _vmem_capacity_bytes():
    try:
        return int(pltpu.get_tpu_info().vmem_capacity_bytes)
    except Exception:
        return 64 * 1024 * 1024  # conservative fallback (v7x per-TC size)


@functools.partial(jax.jit, static_argnames=("tb",))
def improved_nn_forward(x, params, *, tb=None):
    """Fused 3-layer MLP forward. params = (w1, b1, w2, b2, w3, b3), weights (in, out)."""
    w1, b1, w2, b2, w3, b3 = params
    B, in_size = x.shape
    hidden = w1.shape[1]
    out_size = w3.shape[1]

    # ---- Layer-1 MXU packing: fold b1 into w1 via the ones-column trick and
    # zero-pad the contraction dim to the sublane grain (4 state dims + 1 bias -> 8).
    kp = _round_up(in_size + 1, 8)
    w1_aug = (jnp.zeros((kp, hidden), jnp.float32)
              .at[:in_size].set(w1)
              .at[in_size].set(b1[0])).astype(jnp.bfloat16)
    w2b = w2.astype(jnp.bfloat16)
    w3b = w3.astype(jnp.bfloat16)

    x_aug = jnp.concatenate(
        [x, jnp.ones((B, 1), x.dtype), jnp.zeros((B, kp - in_size - 1), x.dtype)],
        axis=1).astype(jnp.bfloat16)

    # ---- Batch tile selection.
    #  * B <= 1024: one full-batch tile (rounded to the 8-row sublane grain).
    #  * B  > 1024: big tiles (multiple of 256, <= 4096) to amortize the ~0.35us/step
    #    grid overhead, but sized so the grid has several steps (>= ~5-8) so v7x's two
    #    TensorCores both get work under dimension_semantics=("parallel",).
    if tb is None:
        if B <= 1024:
            tb = _round_up(B, 8)
        else:
            tb = min(4096, max(256, _round_up(pl.cdiv(B, 8), 256)))
    else:
        # Validate caller tb so the (8,128)-grain BlockSpec rule can't be violated
        # (16-row grain keeps bf16 sublane packing happy when tb < B).
        tb = max(16, _round_up(int(tb), 16))
        if tb >= B:
            tb = _round_up(B, 8)

    padded_B = _round_up(B, tb)
    if padded_B != B:
        x_aug = jnp.pad(x_aug, ((0, padded_B - B), (0, 0)))
    grid = (padded_B // tb,)

    # ---- VMEM budget (accounts for (8,128) lane padding of narrow tiles).
    est = (
        2 * _padded_vmem_bytes(tb, kp, 2)              # x tile, double-buffered, bf16
        + 2 * _padded_vmem_bytes(tb, out_size, 4)      # out tile, double-buffered, f32
        + 2 * _padded_vmem_bytes(tb, hidden, 4)        # h1 / h2 f32 temporaries
        + 2 * _padded_vmem_bytes(tb, hidden, 2)        # bf16 casts of h1 / h2
        + 2 * (_padded_vmem_bytes(kp, hidden, 2)       # resident weights/biases
               + _padded_vmem_bytes(hidden, hidden, 2)
               + _padded_vmem_bytes(hidden, out_size, 2)
               + _padded_vmem_bytes(1, hidden, 4)
               + _padded_vmem_bytes(1, out_size, 4))
    )
    # Never request the full physical VMEM (leave >=16 MiB headroom for the compiler);
    # on v5e/v6e (128 MiB) this still permits much larger tiles than on v7x (64 MiB).
    vmem_limit = int(min(_vmem_capacity_bytes() - 16 * 1024 * 1024,
                         max(32 * 1024 * 1024, 2 * est)))

    resident = lambda shape: pl.BlockSpec(shape, lambda i: (0, 0))  # loaded once

    out = pl.pallas_call(
        mlp_kernel,
        out_shape=jax.ShapeDtypeStruct((padded_B, out_size), jnp.float32),
        grid_spec=pltpu.PrefetchScalarGridSpec(
            num_scalar_prefetch=0,
            grid=grid,
            in_specs=[
                pl.BlockSpec((tb, kp), lambda i: (i, 0)),   # x: streamed per tile
                resident(w1_aug.shape),
                resident(w2b.shape), resident(b2.shape),
                resident(w3b.shape), resident(b3.shape),
            ],
            out_specs=pl.BlockSpec((tb, out_size), lambda i: (i, 0)),
        ),
        compiler_params=pltpu.CompilerParams(
            dimension_semantics=("parallel",),   # shard batch tiles across v7x's 2 TCs
            vmem_limit_bytes=vmem_limit,
        ),
    )(x_aug, w1_aug, w2b, b2, w3b, b3)

    return out[:B]


def init_params(key, input_size=4, hidden_size=128, output_size=2):
    """Deterministic init mirroring PyTorch nn.Linear default:
    U(-1/sqrt(fan_in), 1/sqrt(fan_in)) for both weight and bias."""
    ks = jax.random.split(key, 6)

    def linear(kw, kb, fan_in, fan_out):
        bound = 1.0 / jnp.sqrt(jnp.float32(fan_in))
        w = jax.random.uniform(kw, (fan_in, fan_out), jnp.float32, -bound, bound)
        b = jax.random.uniform(kb, (1, fan_out), jnp.float32, -bound, bound)
        return w, b

    w1, b1 = linear(ks[0], ks[1], input_size, hidden_size)
    w2, b2 = linear(ks[2], ks[3], hidden_size, hidden_size)
    w3, b3 = linear(ks[4], ks[5], hidden_size, output_size)
    return (w1, b1, w2, b2, w3, b3)


if __name__ == "__main__":
    key = jax.random.PRNGKey(0)
    k_x, k_p = jax.random.split(key)

    B, INPUT, HIDDEN, OUTPUT = 8, 4, 128, 2
    x = jax.random.normal(k_x, (B, INPUT), dtype=jnp.float32)
    params = init_params(k_p, INPUT, HIDDEN, OUTPUT)

    out = improved_nn_forward(x, params)
    out = jax.block_until_ready(out)
    assert out.shape == (B, OUTPUT)

    w1, b1, w2, b2, w3, b3 = params

    # Reference with the same numerics as the kernel (bf16 MXU inputs, bias folded
    # into layer 1, f32 accumulation).
    KP = _round_up(INPUT + 1, 8)
    x_aug = jnp.concatenate(
        [x, jnp.ones((B, 1), x.dtype), jnp.zeros((B, KP - INPUT - 1), x.dtype)],
        axis=1).astype(jnp.bfloat16)
    w1_aug = (jnp.zeros((KP, HIDDEN), jnp.float32)
              .at[:INPUT].set(w1).at[INPUT].set(b1[0])).astype(jnp.bfloat16)
    h1 = jnp.maximum(jnp.dot(x_aug, w1_aug, preferred_element_type=jnp.float32), 0.0)
    h2 = jnp.maximum(
        jnp.dot(h1.astype(jnp.bfloat16), w2.astype(jnp.bfloat16),
                preferred_element_type=jnp.float32) + b2, 0.0)
    ref_bf16 = jnp.dot(h2.astype(jnp.bfloat16), w3.astype(jnp.bfloat16),
                       preferred_element_type=jnp.float32) + b3
    assert jnp.allclose(out, ref_bf16, atol=5e-3, rtol=5e-3)

    # Loose check against the pure-f32 PyTorch-equivalent reference (eval-mode dropout).
    h1f = jnp.maximum(x @ w1 + b1, 0.0)
    h2f = jnp.maximum(h1f @ w2 + b2, 0.0)
    ref_f32 = h2f @ w3 + b3
    assert jnp.allclose(out, ref_f32, atol=5e-2, rtol=5e-2)

    print("KERNEL_OK")
</pallas_src>

<mosaic_0001>
module attributes {stable_mosaic.version = 11 : i64} {
  func.func @mlp_kernel(%arg0: i32, %arg1: memref<8x8xbf16, #tpu.memory_space<vmem>>, %arg2: memref<8x128xbf16, #tpu.memory_space<vmem>>, %arg3: memref<128x128xbf16, #tpu.memory_space<vmem>>, %arg4: memref<1x128xf32, #tpu.memory_space<vmem>>, %arg5: memref<128x2xbf16, #tpu.memory_space<vmem>>, %arg6: memref<1x2xf32, #tpu.memory_space<vmem>>, %arg7: memref<8x2xf32, #tpu.memory_space<vmem>>) attributes {dimension_semantics = [#tpu.dimension_semantics<parallel>], iteration_bounds = array<i64: 1>, scalar_prefetch = 0 : i64, scratch_operands = 0 : i64, tpu.core_type = #tpu.core_type<tc>, window_params = [{transform_indices = @transform_0, window_bounds = array<i64: 8, 8>}, {pipeline_mode = #tpu.pipeline_mode<synchronous>, transform_indices = @transform_1, window_bounds = array<i64: 8, 128>}, {pipeline_mode = #tpu.pipeline_mode<synchronous>, transform_indices = @transform_2, window_bounds = array<i64: 128, 128>}, {pipeline_mode = #tpu.pipeline_mode<synchronous>, transform_indices = @transform_3, window_bounds = array<i64: 1, 128>}, {pipeline_mode = #tpu.pipeline_mode<synchronous>, transform_indices = @transform_4, window_bounds = array<i64: 128, 2>}, {pipeline_mode = #tpu.pipeline_mode<synchronous>, transform_indices = @transform_5, window_bounds = array<i64: 1, 2>}, {transform_indices = @transform_6, window_bounds = array<i64: 8, 2>}]} {
    %c0 = arith.constant 0 : index
    %c0_0 = arith.constant 0 : index
    %0 = vector.load %arg1[%c0, %c0_0] : memref<8x8xbf16, #tpu.memory_space<vmem>>, vector<8x8xbf16>
    %c0_1 = arith.constant 0 : index
    %c0_2 = arith.constant 0 : index
    %1 = vector.load %arg2[%c0_1, %c0_2] : memref<8x128xbf16, #tpu.memory_space<vmem>>, vector<8x128xbf16>
    %cst = arith.constant dense<0.000000e+00> : vector<8x128xf32>
    %2 = tpu.matmul %0, %1, %cst {dimension_numbers = #tpu.dot_dimension_numbers<[1], [0], [0], [1], [0, 0, 1, 1], [], []>} : vector<8x8xbf16>, vector<8x128xbf16>, vector<8x128xf32> -> vector<8x128xf32>
    %cst_3 = arith.constant 0.000000e+00 : f32
    %3 = vector.broadcast %cst_3 : f32 to vector<8x128xf32>
    %4 = arith.maximumf %2, %3 : vector<8x128xf32>
    %5 = arith.truncf %4 : vector<8x128xf32> to vector<8x128xbf16>
    %c0_4 = arith.constant 0 : index
    %c0_5 = arith.constant 0 : index
    %6 = vector.load %arg3[%c0_4, %c0_5] : memref<128x128xbf16, #tpu.memory_space<vmem>>, vector<128x128xbf16>
    %cst_6 = arith.constant dense<0.000000e+00> : vector<8x128xf32>
    %7 = tpu.matmul %5, %6, %cst_6 {dimension_numbers = #tpu.dot_dimension_numbers<[1], [0], [0], [1], [0, 0, 1, 1], [], []>} : vector<8x128xbf16>, vector<128x128xbf16>, vector<8x128xf32> -> vector<8x128xf32>
    %c0_7 = arith.constant 0 : index
    %c0_8 = arith.constant 0 : index
    %8 = vector.load %arg4[%c0_7, %c0_8] : memref<1x128xf32, #tpu.memory_space<vmem>>, vector<1x128xf32>
    %9 = vector.broadcast %8 : vector<1x128xf32> to vector<8x128xf32>
    %10 = arith.addf %7, %9 : vector<8x128xf32>
    %cst_9 = arith.constant 0.000000e+00 : f32
    %11 = vector.broadcast %cst_9 : f32 to vector<8x128xf32>
    %12 = arith.maximumf %10, %11 : vector<8x128xf32>
    %13 = arith.truncf %12 : vector<8x128xf32> to vector<8x128xbf16>
    %c0_10 = arith.constant 0 : index
    %c0_11 = arith.constant 0 : index
    %14 = vector.load %arg5[%c0_10, %c0_11] : memref<128x2xbf16, #tpu.memory_space<vmem>>, vector<128x2xbf16>
    %cst_12 = arith.constant dense<0.000000e+00> : vector<8x2xf32>
    %15 = tpu.matmul %13, %14, %cst_12 {dimension_numbers = #tpu.dot_dimension_numbers<[1], [0], [0], [1], [0, 0, 1, 1], [], []>} : vector<8x128xbf16>, vector<128x2xbf16>, vector<8x2xf32> -> vector<8x2xf32>
    %c0_13 = arith.constant 0 : index
    %c0_14 = arith.constant 0 : index
    %16 = vector.load %arg6[%c0_13, %c0_14] : memref<1x2xf32, #tpu.memory_space<vmem>>, vector<1x2xf32>
    %17 = vector.broadcast %16 : vector<1x2xf32> to vector<8x2xf32>
    %18 = arith.addf %15, %17 : vector<8x2xf32>
    %c0_15 = arith.constant 0 : index
    %c0_16 = arith.constant 0 : index
    %19 = vector.load %arg7[%c0_15, %c0_16] : memref<8x2xf32, #tpu.memory_space<vmem>>, vector<8x2xf32>
    tpu.vector_store %arg7[%c0_15, %c0_16], %18 {strides = array<i32>} : memref<8x2xf32, #tpu.memory_space<vmem>>, vector<8x2xf32>,
    return
  }
  func.func @transform_0(%arg0: i32) -> (i32, i32) {
    %c0_i32 = arith.constant 0 : i32
    %c0_i32_0 = arith.constant 0 : i32
    return %arg0, %c0_i32 : i32, i32
  }
  func.func @transform_1(%arg0: i32) -> (i32, i32) {
    %c0_i32 = arith.constant 0 : i32
    %c0_i32_0 = arith.constant 0 : i32
    %c0_i32_1 = arith.constant 0 : i32
    return %c0_i32, %c0_i32_0 : i32, i32
  }
  func.func @transform_2(%arg0: i32) -> (i32, i32) {
    %c0_i32 = arith.constant 0 : i32
    %c0_i32_0 = arith.constant 0 : i32
    %c0_i32_1 = arith.constant 0 : i32
    return %c0_i32, %c0_i32_0 : i32, i32
  }
  func.func @transform_3(%arg0: i32) -> (i32, i32) {
    %c0_i32 = arith.constant 0 : i32
    %c0_i32_0 = arith.constant 0 : i32
    %c0_i32_1 = arith.constant 0 : i32
    return %c0_i32, %c0_i32_0 : i32, i32
  }
  func.func @transform_4(%arg0: i32) -> (i32, i32) {
    %c0_i32 = arith.constant 0 : i32
    %c0_i32_0 = arith.constant 0 : i32
    %c0_i32_1 = arith.constant 0 : i32
    return %c0_i32, %c0_i32_0 : i32, i32
  }
  func.func @transform_5(%arg0: i32) -> (i32, i32) {
    %c0_i32 = arith.constant 0 : i32
    %c0_i32_0 = arith.constant 0 : i32
    %c0_i32_1 = arith.constant 0 : i32
    return %c0_i32, %c0_i32_0 : i32, i32
  }
  func.func @transform_6(%arg0: i32) -> (i32, i32) {
    %c0_i32 = arith.constant 0 : i32
    %c0_i32_0 = arith.constant 0 : i32
    return %arg0, %c0_i32 : i32, i32
  }
}

</mosaic_0001>

<llo_original>
// kernel: improved_nn_forward.1
$region0: #{improved_nn_forward.1}
  #allocation0 [shape = 'u32[]', space=smem, size = 0x4, offset = 0x4, fixed_abs, tag = 'smem constant byte address 0x4 - core index']
  #allocation1 [shape = 'u32[72,128]{1,0:T(1,128)}', space=vmem, size = 0x9000, scoped, tag = 'internal scratch']
  %s0 = inlined_call_operand.vmem [shape: bf16[8,8], index: 0, kind: input, shape index: {}]
  %s1 = inlined_call_operand.vmem [shape: bf16[8,128], index: 1, kind: input, shape index: {}]
  %s2 = inlined_call_operand.vmem [shape: bf16[128,128], index: 2, kind: input, shape index: {}]
  %s3 = inlined_call_operand.vmem [shape: f32[1,128], index: 3, kind: input, shape index: {}]
  %s4 = inlined_call_operand.vmem [shape: bf16[128,2], index: 4, kind: input, shape index: {}]
  %s5 = inlined_call_operand.vmem [shape: f32[1,2], index: 5, kind: input, shape index: {}]
  %s6 = inlined_call_operand.vmem [shape: f32[8,2], index: 6, kind: output, shape index: {}]
  %s7 = sld [smem:[#allocation0]]
  $region34: #{improved_nn_forward.1} parent=0
    _
  %s9 = ssub.s32 1, %s7
  %s10 = scalar_select 0, %s9, %s7
  // Predicated region
  $region2: #{improved_nn_forward.1} parent=0 // pred_check
    _
  $region3: #{improved_nn_forward.1} parent=0 // pred_check_branch
    %12 = sbr.rel (0) target = $region5
  $region4: #{improved_nn_forward.1} parent=0 // pred_region
    _
  $region5: #{improved_nn_forward.1} parent=0 // pred_fallthru
    _
  // Predicated region
  $region6: #{improved_nn_forward.1} parent=0 // pred_check
    _
  $region7: #{improved_nn_forward.1} parent=0 // pred_check_branch
    %14 = sbr.rel (0) target = $region9
  $region8: #{improved_nn_forward.1} parent=0 // pred_region
    _
  $region9: #{improved_nn_forward.1} parent=0 // pred_fallthru
    _
  // Predicated region
  $region10: #{improved_nn_forward.1} parent=0 // pred_check
    _
  $region11: #{improved_nn_forward.1} parent=0 // pred_check_branch
    %16 = sbr.rel (0) target = $region13
  $region12: #{improved_nn_forward.1} parent=0 // pred_region
    _
  $region13: #{improved_nn_forward.1} parent=0 // pred_fallthru
    _
  // Predicated region
  $region14: #{improved_nn_forward.1} parent=0 // pred_check
    _
  $region15: #{improved_nn_forward.1} parent=0 // pred_check_branch
    %18 = sbr.rel (0) target = $region17
  $region16: #{improved_nn_forward.1} parent=0 // pred_region
    _
  $region17: #{improved_nn_forward.1} parent=0 // pred_fallthru
    _
  // Predicated region
  $region18: #{improved_nn_forward.1} parent=0 // pred_check
    _
  $region19: #{improved_nn_forward.1} parent=0 // pred_check_branch
    %20 = sbr.rel (0) target = $region21
  $region20: #{improved_nn_forward.1} parent=0 // pred_region
    _
  $region21: #{improved_nn_forward.1} parent=0 // pred_fallthru
    _
  // Predicated region
  $region22: #{improved_nn_forward.1} parent=0 // pred_check
    _
  $region23: #{improved_nn_forward.1} parent=0 // pred_check_branch
    %22 = sbr.rel (0) target = $region25
  $region24: #{improved_nn_forward.1} parent=0 // pred_region
    _
  $region25: #{improved_nn_forward.1} parent=0 // pred_fallthru
    _
  %v24 = vld [vmem:[%s0] sm:$0xf]
  %v25 = vld [vmem:[%s1] sm:$0xf]
  %vm26 = vcmask 64512
  %v28 = vsel %vm26, %v24, 0
  %vm30 = vcmask 1043456
  %v32 = vsel %vm30, %v25, 0
  %34 = vmatpush.bf16.msra.mxu0 0
  %35 = vmatpush.bf16.msra.mxu0 0
  %36 = vmatpush.bf16.msra.mxu0 0
  %37 = vmatpush.bf16.msra.mxu0 0
  %38 = vmatpush.bf16.msra.mxu0 0
  %39 = vmatpush.bf16.msra.mxu0 0
  %40 = vmatpush.bf16.msra.mxu0 0
  %41 = vmatpush.bf16.msra.mxu0 %v32
  %42 = vmatmul.bf16.gmra.mxu0 %v28
  %v43 = vpop.f32.mrf.mxu0
  %v44 = vadd.f32 0.0, %v43
  %v45 = vpop.f32.mrf.mxu0
  %46 = vdwg.mxu0
  %v47 = vmax.f32 %v44, 0.0
  %v48 = vpack.c.bf16 %v47, %v47
  %v49 = vld [vmem:[%s2] sm:$0xf]
  %v50 = vld [vmem:[%s2 + $0x4] sm:$0xf]
  %v51 = vld [vmem:[%s2 + $0x8] sm:$0xf]
  %v52 = vld [vmem:[%s2 + $0xc] sm:$0xf]
  %v53 = vld [vmem:[%s2 + $0x10] sm:$0xf]
  %v54 = vld [vmem:[%s2 + $0x14] sm:$0xf]
  %v55 = vld [vmem:[%s2 + $0x18] sm:$0xf]
  %v56 = vld [vmem:[%s2 + $0x1c] sm:$0xf]
  %v57 = vld [vmem:[%s2 + $0x20] sm:$0xf]
  %v58 = vld [vmem:[%s2 + $0x24] sm:$0xf]
  %v59 = vld [vmem:[%s2 + $0x28] sm:$0xf]
  %v60 = vld [vmem:[%s2 + $0x2c] sm:$0xf]
  %v61 = vld [vmem:[%s2 + $0x30] sm:$0xf]
  %v62 = vld [vmem:[%s2 + $0x34] sm:$0xf]
  %v63 = vld [vmem:[%s2 + $0x38] sm:$0xf]
  %v64 = vld [vmem:[%s2 + $0x3c] sm:$0xf]
  %v65 = vld [vmem:[%s3] sm:$0x1]
  %v67 = vperm.slane %v65, 0
  %v85 = vunpack.c.l.b16 %v49
  %v86 = vunpack.c.l.b16 %v50
  %v87 = vunpack.c.l.b16 %v51
  %v88 = vunpack.c.l.b16 %v52
  %v89 = vunpack.c.l.b16 %v53
  %v90 = vunpack.c.l.b16 %v54
  %v91 = vunpack.c.l.b16 %v55
  %v92 = vunpack.c.l.b16 %v56
  %v93 = vunpack.c.l.b16 %v57
  %v94 = vunpack.c.l.b16 %v58
  %v95 = vunpack.c.l.b16 %v59
  %v96 = vunpack.c.l.b16 %v60
  %v97 = vunpack.c.l.b16 %v61
  %v98 = vunpack.c.l.b16 %v62
  %v99 = vunpack.c.l.b16 %v63
  %v100 = vunpack.c.l.b16 %v64
  %v101 = vpack.c.b16 %v86, %v85
  %v102 = vpack.c.b16 %v88, %v87
  %v103 = vpack.c.b16 %v90, %v89
  %v104 = vpack.c.b16 %v92, %v91
  %v105 = vpack.c.b16 %v94, %v93
  %v106 = vpack.c.b16 %v96, %v95
  %v107 = vpack.c.b16 %v98, %v97
  %v108 = vpack.c.b16 %v100, %v99
  %117 = vmatpush.bf16.msra.mxu0 %v108
  %118 = vmatpush.bf16.msra.mxu0 %v107
  %119 = vmatpush.bf16.msra.mxu0 %v106
  %120 = vmatpush.bf16.msra.mxu0 %v105
  %121 = vmatpush.bf16.msra.mxu0 %v104
  %122 = vmatpush.bf16.msra.mxu0 %v103
  %123 = vmatpush.bf16.msra.mxu0 %v102
  %124 = vmatpush.bf16.msra.mxu0 %v101
  %125 = vmatmul.bf16.gmra.mxu0 %v48
  %v126 = vpop.f32.mrf.mxu0
  %v127 = vadd.f32 %v67, %v126
  %v128 = vpop.f32.mrf.mxu0
  %129 = vdwg.mxu0
  %v130 = vmax.f32 %v127, 0.0
  %v131 = vpack.c.bf16 %v130, %v130
  %v132 = vld [vmem:[%s4] sm:$0xf]
  %v133 = vld [vmem:[%s4 + $0x4] sm:$0xf]
  %v134 = vld [vmem:[%s4 + $0x8] sm:$0xf]
  %v135 = vld [vmem:[%s4 + $0xc] sm:$0xf]
  %v136 = vld [vmem:[%s4 + $0x10] sm:$0xf]
  %v137 = vld [vmem:[%s4 + $0x14] sm:$0xf]
  %v138 = vld [vmem:[%s4 + $0x18] sm:$0xf]
  %v139 = vld [vmem:[%s4 + $0x1c] sm:$0xf]
  %v140 = vld [vmem:[%s4 + $0x20] sm:$0xf]
  %v141 = vld [vmem:[%s4 + $0x24] sm:$0xf]
  %v142 = vld [vmem:[%s4 + $0x28] sm:$0xf]
  %v143 = vld [vmem:[%s4 + $0x2c] sm:$0xf]
  %v144 = vld [vmem:[%s4 + $0x30] sm:$0xf]
  %v145 = vld [vmem:[%s4 + $0x34] sm:$0xf]
  %v146 = vld [vmem:[%s4 + $0x38] sm:$0xf]
  %v147 = vld [vmem:[%s4 + $0x3c] sm:$0xf]
  %v148 = vld [vmem:[%s5] sm:$0x1]
  %v150 = vperm.slane %v148, 0
  %v168 = vunpack.c.l.b16 %v132
  %v169 = vunpack.c.l.b16 %v133
  %v170 = vunpack.c.l.b16 %v134
  %v171 = vunpack.c.l.b16 %v135
  %v172 = vunpack.c.l.b16 %v136
  %v173 = vunpack.c.l.b16 %v137
  %v174 = vunpack.c.l.b16 %v138
  %v175 = vunpack.c.l.b16 %v139
  %v176 = vunpack.c.l.b16 %v140
  %v177 = vunpack.c.l.b16 %v141
  %v178 = vunpack.c.l.b16 %v142
  %v179 = vunpack.c.l.b16 %v143
  %v180 = vunpack.c.l.b16 %v144
  %v181 = vunpack.c.l.b16 %v145
  %v182 = vunpack.c.l.b16 %v146
  %v183 = vunpack.c.l.b16 %v147
  %v184 = vpack.c.b16 %v169, %v168
  %v185 = vpack.c.b16 %v171, %v170
  %v186 = vpack.c.b16 %v173, %v172
  %v187 = vpack.c.b16 %v175, %v174
  %v188 = vpack.c.b16 %v177, %v176
  %v189 = vpack.c.b16 %v179, %v178
  %v190 = vpack.c.b16 %v181, %v180
  %v191 = vpack.c.b16 %v183, %v182
  %200 = vmatpush.bf16.msra.mxu0 %v191
  %201 = vmatpush.bf16.msra.mxu0 %v190
  %202 = vmatpush.bf16.msra.mxu0 %v189
  %203 = vmatpush.bf16.msra.mxu0 %v188
  %204 = vmatpush.bf16.msra.mxu0 %v187
  %205 = vmatpush.bf16.msra.mxu0 %v186
  %206 = vmatpush.bf16.msra.mxu0 %v185
  %207 = vmatpush.bf16.msra.mxu0 %v184
  %208 = vmatmul.bf16.gmra.mxu0 %v131
  %v209 = vpop.f32.mrf.mxu0
  %v210 = vadd.f32 %v150, %v209
  %v211 = vpop.f32.mrf.mxu0
  %212 = vdwg.mxu0
  %vm213 = vcmask 15360
  %214 = vst.msk [vmem:[%s6] sm:$0xff] %vm213, %v210
  // Predicated region
  $region26: #{improved_nn_forward.1} parent=0 // pred_check
    _
  $region27: #{improved_nn_forward.1} parent=0 // pred_check_branch
    %216 = sbr.rel (0) target = $region29
  $region28: #{improved_nn_forward.1} parent=0 // pred_region
    _
  $region29: #{improved_nn_forward.1} parent=0 // pred_fallthru
    _
  // Predicated region
  $region30: #{improved_nn_forward.1} parent=0 // pred_check
    _
  $region31: #{improved_nn_forward.1} parent=0 // pred_check_branch
    %218 = sbr.rel (0) target = $region33
  $region32: #{improved_nn_forward.1} parent=0 // pred_region
    _
  $region33: #{improved_nn_forward.1} parent=0 // pred_fallthru
    _

</llo_original>
